<compile_context>
chip_gen: v5e
topology: v5e:2x2
jax: 0.10.0
libtpu: 0.0.40
codegen_flags: <defaults>
</compile_context>

<pallas_src>
import jax
import jax.numpy as jnp
from jax.experimental import pallas as pl
from jax.experimental.pallas import tpu as pltpu

IN_F = 40
HID_F = 60
OUT_F = 78

HID_PAD = 64          # hidden width padded only to a sublane-friendly size
MAX_TB = 8192         # max batch tile (rows); ~18-20 MiB live VMEM at f32
VMEM_LIMIT_BYTES = 32 * 1024 * 1024


def decoder_kernel(x_ref, w1_ref, b1_ref, w2_ref, b2_ref, o_ref):
    # x_ref:  [TB, 40]
    # w1_ref: [40, HID_PAD], b1_ref: [1, HID_PAD]
    # w2_ref: [HID_PAD, 78], b2_ref: [1, 78]
    # o_ref:  [TB, 78]
    x = x_ref[...]
    h = jnp.dot(x, w1_ref[...], preferred_element_type=jnp.float32) + b1_ref[...]
    h = jnp.tanh(h)
    y = jnp.dot(h, w2_ref[...], preferred_element_type=jnp.float32) + b2_ref[...]
    o_ref[...] = y.astype(o_ref.dtype)


def pad_params(w1, b1, w2, b2):
    """Pad params once (outside the hot path).

    w1: [40, 60], b1: [1, 60], w2: [60, 78], b2: [1, 78]  (already [in, out]).
    Padding is exact: extra hidden cols give tanh(0)=0 and the matching w2
    rows are zero, so they contribute nothing.
    """
    w1p = jnp.zeros((IN_F, HID_PAD), jnp.float32).at[:, :HID_F].set(w1)
    b1p = jnp.zeros((1, HID_PAD), jnp.float32).at[:, :HID_F].set(b1)
    w2p = jnp.zeros((HID_PAD, OUT_F), jnp.float32).at[:HID_F, :].set(w2)
    b2p = jnp.asarray(b2, jnp.float32).reshape(1, OUT_F)
    return w1p, b1p, w2p, b2p


def _choose_tb(B):
    rounded = ((B + 7) // 8) * 8
    if rounded <= MAX_TB:
        return rounded
    # B spans multiple tiles: pick an even number of grid steps so the two
    # TensorCores on v7x get balanced work; v5e/v6e (1 TC) are unaffected.
    n = pl.cdiv(rounded, MAX_TB)
    if n % 2 == 1:
        n += 1
    return ((pl.cdiv(rounded, n) + 7) // 8) * 8


def gen_autoencoder_decoder(x, w1p, b1p, w2p, b2p):
    """x: [B, 40] float32 -> [B, 78] float32. Params must be pre-padded."""
    B = x.shape[0]
    TB = _choose_tb(B)
    grid = (pl.cdiv(B, TB),)

    cost = pl.CostEstimate(
        flops=2 * B * (IN_F * HID_PAD + HID_PAD * OUT_F),
        transcendentals=B * HID_PAD,
        bytes_accessed=B * (IN_F + OUT_F) * 4
        + (IN_F * HID_PAD + HID_PAD + HID_PAD * OUT_F + OUT_F) * 4,
    )

    return pl.pallas_call(
        decoder_kernel,
        out_shape=jax.ShapeDtypeStruct((B, OUT_F), jnp.float32),
        grid=grid,
        in_specs=[
            pl.BlockSpec((TB, IN_F), lambda i: (i, 0)),          # x: batch-tiled
            pl.BlockSpec((IN_F, HID_PAD), lambda i: (0, 0)),     # w1: resident
            pl.BlockSpec((1, HID_PAD), lambda i: (0, 0)),        # b1: resident
            pl.BlockSpec((HID_PAD, OUT_F), lambda i: (0, 0)),    # w2: resident
            pl.BlockSpec((1, OUT_F), lambda i: (0, 0)),          # b2: resident
        ],
        out_specs=pl.BlockSpec((TB, OUT_F), lambda i: (i, 0)),   # native 78-wide store
        compiler_params=pltpu.CompilerParams(
            dimension_semantics=("parallel",),
            vmem_limit_bytes=VMEM_LIMIT_BYTES,
        ),
        cost_estimate=cost,
    )(x, w1p, b1p, w2p, b2p)


def init_params(key):
    # Deterministic init mimicking nn.Linear's uniform(-1/sqrt(fan_in), 1/sqrt(fan_in)).
    k1, k2, k3, k4 = jax.random.split(key, 4)
    bound1 = 1.0 / jnp.sqrt(IN_F)
    bound2 = 1.0 / jnp.sqrt(HID_F)
    w1 = jax.random.uniform(k1, (IN_F, HID_F), jnp.float32, -bound1, bound1)
    b1 = jax.random.uniform(k2, (1, HID_F), jnp.float32, -bound1, bound1)
    w2 = jax.random.uniform(k3, (HID_F, OUT_F), jnp.float32, -bound2, bound2)
    b2 = jax.random.uniform(k4, (1, OUT_F), jnp.float32, -bound2, bound2)
    return w1, b1, w2, b2


def reference(x, w1, b1, w2, b2):
    h = jnp.tanh(x @ w1 + b1)
    return h @ w2 + b2


if __name__ == "__main__":
    key = jax.random.PRNGKey(0)
    kx, kp = jax.random.split(key)
    B = 8
    x = jax.random.normal(kx, (B, IN_F), jnp.float32)
    w1, b1, w2, b2 = init_params(kp)

    # Pad once, outside the hot path.
    w1p, b1p, w2p, b2p = pad_params(w1, b1, w2, b2)

    out = gen_autoencoder_decoder(x, w1p, b1p, w2p, b2p)
    jax.block_until_ready(out)

    ref = reference(x, w1, b1, w2, b2)
    assert out.shape == (B, OUT_F)
    assert jnp.allclose(out, ref, atol=1e-5, rtol=1e-5)

    print("KERNEL_OK")
</pallas_src>

<mosaic_0001>
module attributes {stable_mosaic.version = 11 : i64} {
  func.func @decoder_kernel(%arg0: i32, %arg1: memref<8x40xf32, #tpu.memory_space<vmem>>, %arg2: memref<40x64xf32, #tpu.memory_space<vmem>>, %arg3: memref<1x64xf32, #tpu.memory_space<vmem>>, %arg4: memref<64x78xf32, #tpu.memory_space<vmem>>, %arg5: memref<1x78xf32, #tpu.memory_space<vmem>>, %arg6: memref<8x78xf32, #tpu.memory_space<vmem>>) attributes {dimension_semantics = [#tpu.dimension_semantics<parallel>], iteration_bounds = array<i64: 1>, scalar_prefetch = 0 : i64, scratch_operands = 0 : i64, tpu.core_type = #tpu.core_type<tc>, window_params = [{transform_indices = @transform_0, window_bounds = array<i64: 8, 40>}, {pipeline_mode = #tpu.pipeline_mode<synchronous>, transform_indices = @transform_1, window_bounds = array<i64: 40, 64>}, {pipeline_mode = #tpu.pipeline_mode<synchronous>, transform_indices = @transform_2, window_bounds = array<i64: 1, 64>}, {pipeline_mode = #tpu.pipeline_mode<synchronous>, transform_indices = @transform_3, window_bounds = array<i64: 64, 78>}, {pipeline_mode = #tpu.pipeline_mode<synchronous>, transform_indices = @transform_4, window_bounds = array<i64: 1, 78>}, {transform_indices = @transform_5, window_bounds = array<i64: 8, 78>}]} {
    %c0 = arith.constant 0 : index
    %c0_0 = arith.constant 0 : index
    %0 = vector.load %arg1[%c0, %c0_0] : memref<8x40xf32, #tpu.memory_space<vmem>>, vector<8x40xf32>
    %c0_1 = arith.constant 0 : index
    %c0_2 = arith.constant 0 : index
    %1 = vector.load %arg2[%c0_1, %c0_2] : memref<40x64xf32, #tpu.memory_space<vmem>>, vector<40x64xf32>
    %cst = arith.constant dense<0.000000e+00> : vector<8x64xf32>
    %2 = tpu.matmul %0, %1, %cst {dimension_numbers = #tpu.dot_dimension_numbers<[1], [0], [0], [1], [0, 0, 1, 1], [], []>} : vector<8x40xf32>, vector<40x64xf32>, vector<8x64xf32> -> vector<8x64xf32>
    %c0_3 = arith.constant 0 : index
    %c0_4 = arith.constant 0 : index
    %3 = vector.load %arg3[%c0_3, %c0_4] : memref<1x64xf32, #tpu.memory_space<vmem>>, vector<1x64xf32>
    %4 = vector.broadcast %3 : vector<1x64xf32> to vector<8x64xf32>
    %5 = arith.addf %2, %4 : vector<8x64xf32>
    %6 = math.tanh %5 : vector<8x64xf32>
    %c0_5 = arith.constant 0 : index
    %c0_6 = arith.constant 0 : index
    %7 = vector.load %arg4[%c0_5, %c0_6] : memref<64x78xf32, #tpu.memory_space<vmem>>, vector<64x78xf32>
    %cst_7 = arith.constant dense<0.000000e+00> : vector<8x78xf32>
    %8 = tpu.matmul %6, %7, %cst_7 {dimension_numbers = #tpu.dot_dimension_numbers<[1], [0], [0], [1], [0, 0, 1, 1], [], []>} : vector<8x64xf32>, vector<64x78xf32>, vector<8x78xf32> -> vector<8x78xf32>
    %c0_8 = arith.constant 0 : index
    %c0_9 = arith.constant 0 : index
    %9 = vector.load %arg5[%c0_8, %c0_9] : memref<1x78xf32, #tpu.memory_space<vmem>>, vector<1x78xf32>
    %10 = vector.broadcast %9 : vector<1x78xf32> to vector<8x78xf32>
    %11 = arith.addf %8, %10 : vector<8x78xf32>
    %c0_10 = arith.constant 0 : index
    %c0_11 = arith.constant 0 : index
    %12 = vector.load %arg6[%c0_10, %c0_11] : memref<8x78xf32, #tpu.memory_space<vmem>>, vector<8x78xf32>
    tpu.vector_store %arg6[%c0_10, %c0_11], %11 {strides = array<i32>} : memref<8x78xf32, #tpu.memory_space<vmem>>, vector<8x78xf32>,
    return
  }
  func.func @transform_0(%arg0: i32) -> (i32, i32) {
    %c0_i32 = arith.constant 0 : i32
    %c0_i32_0 = arith.constant 0 : i32
    return %arg0, %c0_i32 : i32, i32
  }
  func.func @transform_1(%arg0: i32) -> (i32, i32) {
    %c0_i32 = arith.constant 0 : i32
    %c0_i32_0 = arith.constant 0 : i32
    %c0_i32_1 = arith.constant 0 : i32
    return %c0_i32, %c0_i32_0 : i32, i32
  }
  func.func @transform_2(%arg0: i32) -> (i32, i32) {
    %c0_i32 = arith.constant 0 : i32
    %c0_i32_0 = arith.constant 0 : i32
    %c0_i32_1 = arith.constant 0 : i32
    return %c0_i32, %c0_i32_0 : i32, i32
  }
  func.func @transform_3(%arg0: i32) -> (i32, i32) {
    %c0_i32 = arith.constant 0 : i32
    %c0_i32_0 = arith.constant 0 : i32
    %c0_i32_1 = arith.constant 0 : i32
    return %c0_i32, %c0_i32_0 : i32, i32
  }
  func.func @transform_4(%arg0: i32) -> (i32, i32) {
    %c0_i32 = arith.constant 0 : i32
    %c0_i32_0 = arith.constant 0 : i32
    %c0_i32_1 = arith.constant 0 : i32
    return %c0_i32, %c0_i32_0 : i32, i32
  }
  func.func @transform_5(%arg0: i32) -> (i32, i32) {
    %c0_i32 = arith.constant 0 : i32
    %c0_i32_0 = arith.constant 0 : i32
    return %arg0, %c0_i32 : i32, i32
  }
}

</mosaic_0001>

<llo_original>
// kernel: tpu_custom_call.1
$region0: #{tpu_custom_call.1}
  #allocation0 [shape = 'u32[]', space=smem, size = 0x4, offset = 0x4, fixed_abs, tag = 'smem constant byte address 0x4 - core index']
  #allocation1 [shape = 'u32[72,128]{1,0:T(1,128)}', space=vmem, size = 0x9000, scoped, tag = 'internal scratch']
  %s0 = inlined_call_operand.hbm [shape: f32[8,40], index: 0, kind: input, shape index: {}]
  %s1 = inlined_call_operand.hbm [shape: f32[40,64], index: 1, kind: input, shape index: {}]
  %s2 = inlined_call_operand.vmem [shape: f32[1,64], index: 2, kind: input, shape index: {}]
  %s3 = inlined_call_operand.hbm [shape: f32[64,78], index: 3, kind: input, shape index: {}]
  %s4 = inlined_call_operand.vmem [shape: f32[1,78], index: 4, kind: input, shape index: {}]
  %s5 = inlined_call_operand.hbm [shape: f32[8,78], index: 5, kind: output, shape index: {}]
  %s6 = sld [smem:[#allocation0]]
  $region42: #{tpu_custom_call.1} parent=0
    _
  %s8 = ssub.s32 1, %s6
  %s9 = scalar_select 0, %s8, %s6
  $region1: #{tpu_custom_call.1} parent=0
    #allocation2 [shape = 'u8[4096]{0}', space=vmem, size = 0x1000, scoped, tag = 'input window, operand 0, single buffered']
    #allocation3 [shape = 's32[1]{0}', space=sflag, size = 0x4, scoped, tag = 'scoped memory for tpu_custom_call.1']
    #allocation4 [shape = 's32[1]{0}', space=sflag, size = 0x4, scoped, tag = 'scoped memory for tpu_custom_call.1']
    #allocation5 [shape = 'u8[20480]{0}', space=vmem, size = 0x5000, scoped, tag = 'input window, operand 1, single buffered']
    #allocation6 [shape = 's32[1]{0}', space=sflag, size = 0x4, scoped, tag = 'scoped memory for tpu_custom_call.1']
    #allocation7 [shape = 'u8[32768]{0}', space=vmem, size = 0x8000, scoped, tag = 'input window, operand 3, single buffered']
    #allocation8 [shape = 'u8[4096]{0}', space=vmem, size = 0x1000, scoped, tag = 'output window, operand 0, single buffered']
    %10 = vsyncpa [#allocation3], 0
    %11 = vsyncpa [#allocation6], 0
    %12 = vsyncpa [#allocation4], 0
    // Predicated region
    $region2: #{tpu_custom_call.1} parent=1 // pred_check
      _
    $region3: #{tpu_custom_call.1} parent=1 // pred_check_branch
      %14 = sbr.rel (0) target = $region5
    $region4: #{tpu_custom_call.1} parent=1 // pred_region
      %16 = vsyncadd [#allocation3], 0
      %s18 = sshll.u32 %s0, 4
      %s19 = int_to_ptr.hbm [resolvable:$true] %s18
      %s20 = sshll.u32 [#allocation2], 4
      %s21 = int_to_ptr.vmem [resolvable:$true] %s20
      %23 = dma.hbm_to_vmem [thread:$0]  %s19, 128, %s21, [#allocation3]
    $region5: #{tpu_custom_call.1} parent=1 // pred_fallthru
      _
    // Predicated region
    $region6: #{tpu_custom_call.1} parent=1 // pred_check
      _
    $region7: #{tpu_custom_call.1} parent=1 // pred_check_branch
      %25 = sbr.rel (0) target = $region9
    $region8: #{tpu_custom_call.1} parent=1 // pred_region
      %27 = vsyncadd [#allocation6], 0
      %s28 = sshll.u32 %s1, 4
      %s29 = int_to_ptr.hbm [resolvable:$true] %s28
      %s30 = sshll.u32 [#allocation5], 4
      %s31 = int_to_ptr.vmem [resolvable:$true] %s30
      %36 = dma.hbm_to_vmem [thread:$0]  %s29, 640, %s31, [#allocation6], 128, 128, 8
    $region9: #{tpu_custom_call.1} parent=1 // pred_fallthru
      _
    // Predicated region
    $region10: #{tpu_custom_call.1} parent=1 // pred_check
      _
    $region11: #{tpu_custom_call.1} parent=1 // pred_check_branch
      %38 = sbr.rel (0) target = $region13
    $region12: #{tpu_custom_call.1} parent=1 // pred_region
      _
    $region13: #{tpu_custom_call.1} parent=1 // pred_fallthru
      _
    // Predicated region
    $region14: #{tpu_custom_call.1} parent=1 // pred_check
      _
    $region15: #{tpu_custom_call.1} parent=1 // pred_check_branch
      %40 = sbr.rel (0) target = $region17
    $region16: #{tpu_custom_call.1} parent=1 // pred_region
      %42 = vsyncadd [#allocation6], 0
      %s43 = sshll.u32 %s3, 4
      %s44 = int_to_ptr.hbm [resolvable:$true] %s43
      %s45 = sshll.u32 [#allocation7], 4
      %s46 = int_to_ptr.vmem [resolvable:$true] %s45
      %51 = dma.hbm_to_vmem [thread:$0]  %s44, 1024, %s46, [#allocation6], 128, 128, 8
    $region17: #{tpu_custom_call.1} parent=1 // pred_fallthru
      _
    // Predicated region
    $region18: #{tpu_custom_call.1} parent=1 // pred_check
      _
    $region19: #{tpu_custom_call.1} parent=1 // pred_check_branch
      %53 = sbr.rel (0) target = $region21
    $region20: #{tpu_custom_call.1} parent=1 // pred_region
      _
    $region21: #{tpu_custom_call.1} parent=1 // pred_fallthru
      _
    // Predicated region
    $region22: #{tpu_custom_call.1} parent=1 // pred_check
      _
    $region23: #{tpu_custom_call.1} parent=1 // pred_check_branch
      %55 = sbr.rel (0) target = $region25
    $region24: #{tpu_custom_call.1} parent=1 // pred_region
      %57 = dma.done [#allocation3], 128
    $region25: #{tpu_custom_call.1} parent=1 // pred_fallthru
      _
    // Predicated region
    $region26: #{tpu_custom_call.1} parent=1 // pred_check
      _
    $region27: #{tpu_custom_call.1} parent=1 // pred_check_branch
      %59 = sbr.rel (0) target = $region29
    $region28: #{tpu_custom_call.1} parent=1 // pred_region
      %61 = dma.done [#allocation6], 640
    $region29: #{tpu_custom_call.1} parent=1 // pred_fallthru
      _
    // Predicated region
    $region30: #{tpu_custom_call.1} parent=1 // pred_check
      _
    $region31: #{tpu_custom_call.1} parent=1 // pred_check_branch
      %63 = sbr.rel (0) target = $region33
    $region32: #{tpu_custom_call.1} parent=1 // pred_region
      %65 = dma.done [#allocation6], 1024
    $region33: #{tpu_custom_call.1} parent=1 // pred_fallthru
      _
    %v66 = vld [vmem:[#allocation2] sm:$0xff]
    %v67 = vld [vmem:[#allocation5] sm:$0xff]
    %v68 = vld [vmem:[#allocation5 + $0x8] sm:$0xff]
    %v69 = vld [vmem:[#allocation5 + $0x10] sm:$0xff]
    %v70 = vld [vmem:[#allocation5 + $0x18] sm:$0xff]
    %v71 = vld [vmem:[#allocation5 + $0x20] sm:$0xff]
    %v72 = vld [vmem:[%s2] sm:$0x1]
    %v74 = vperm.slane %v72, 0
    %vm76 = vcmask 326656
    %v78 = vsel %vm76, %v66, 0
    %80 = vmatpush.msra.mxu0 0.0
    %81 = vmatpush.msra.mxu0 0.0
    %82 = vmatpush.msra.mxu0 0.0
    %83 = vmatpush.msra.mxu0 0.0
    %84 = vmatpush.msra.mxu0 0.0
    %85 = vmatpush.msra.mxu0 0.0
    %86 = vmatpush.msra.mxu0 0.0
    %87 = vmatpush.msra.mxu0 0.0
    %88 = vmatpush.msra.mxu0 0.0
    %89 = vmatpush.msra.mxu0 0.0
    %90 = vmatpush.msra.mxu0 0.0
    %91 = vmatpush.msra.mxu0 %v71
    %92 = vmatpush.msra.mxu0 %v70
    %93 = vmatpush.msra.mxu0 %v69
    %94 = vmatpush.msra.mxu0 %v68
    %95 = vmatpush.msra.mxu0 %v67
    %96 = vmatmul.f32.gmra.mxu0 %v78
    %v97 = vpop.f32.mrf.mxu0
    %v98 = vadd.f32 %v74, %v97
    %99 = vdwg.mxu0
    %v100 = vtanh.pop %v98
    %v101 = vld [vmem:[#allocation7] sm:$0xff]
    %v102 = vld [vmem:[#allocation7 + $0x8] sm:$0xff]
    %v103 = vld [vmem:[#allocation7 + $0x10] sm:$0xff]
    %v104 = vld [vmem:[#allocation7 + $0x18] sm:$0xff]
    %v105 = vld [vmem:[#allocation7 + $0x20] sm:$0xff]
    %v106 = vld [vmem:[#allocation7 + $0x28] sm:$0xff]
    %v107 = vld [vmem:[#allocation7 + $0x30] sm:$0xff]
    %v108 = vld [vmem:[#allocation7 + $0x38] sm:$0xff]
    %v109 = vld [vmem:[%s4] sm:$0x1]
    %v111 = vperm.slane %v109, 0
    %vm113 = vcmask 523264
    %v115 = vsel %vm113, %v100, 0
    %117 = vmatpush.msra.mxu0 0.0
    %118 = vmatpush.msra.mxu0 0.0
    %119 = vmatpush.msra.mxu0 0.0
    %120 = vmatpush.msra.mxu0 0.0
    %121 = vmatpush.msra.mxu0 0.0
    %122 = vmatpush.msra.mxu0 0.0
    %123 = vmatpush.msra.mxu0 0.0
    %124 = vmatpush.msra.mxu0 0.0
    %125 = vmatpush.msra.mxu0 %v108
    %126 = vmatpush.msra.mxu0 %v107
    %127 = vmatpush.msra.mxu0 %v106
    %128 = vmatpush.msra.mxu0 %v105
    %129 = vmatpush.msra.mxu0 %v104
    %130 = vmatpush.msra.mxu0 %v103
    %131 = vmatpush.msra.mxu0 %v102
    %132 = vmatpush.msra.mxu0 %v101
    %133 = vmatmul.f32.gmra.mxu0 %v115
    %v134 = vpop.f32.mrf.mxu0
    %v135 = vadd.f32 %v111, %v134
    %136 = vdwg.mxu0
    %vm137 = vcmask 637952
    %138 = vst.msk [vmem:[#allocation8] sm:$0xff] %vm137, %v135
    // Predicated region
    $region34: #{tpu_custom_call.1} parent=1 // pred_check
      _
    $region35: #{tpu_custom_call.1} parent=1 // pred_check_branch
      %140 = sbr.rel (0) target = $region37
    $region36: #{tpu_custom_call.1} parent=1 // pred_region
      %142 = vsyncadd [#allocation4], 0
      %s144 = sshll.u32 [#allocation8], 4
      %s145 = int_to_ptr.vmem [resolvable:$true] %s144
      %s146 = sshll.u32 %s5, 4
      %s147 = int_to_ptr.hbm [resolvable:$true] %s146
      %149 = dma.vmem_to_hbm [thread:$0]  %s145, 128, %s147, [#allocation4]
    $region37: #{tpu_custom_call.1} parent=1 // pred_fallthru
      _
    // Predicated region
    $region38: #{tpu_custom_call.1} parent=1 // pred_check
      _
    $region39: #{tpu_custom_call.1} parent=1 // pred_check_branch
      %151 = sbr.rel (0) target = $region41
    $region40: #{tpu_custom_call.1} parent=1 // pred_region
      %153 = dma.done [#allocation4], 128
    $region41: #{tpu_custom_call.1} parent=1 // pred_fallthru
      _
    %154 = vsyncpa [#allocation3], 1
    %155 = vsyncpa [#allocation6], 1
    %156 = vsyncpa [#allocation4], 1

</llo_original>
